<compile_context>
chip_gen: v7x
topology: tpu7x:2x2x1
jax: 0.10.0
libtpu: 0.0.40
codegen_flags: <defaults>
</compile_context>

<pallas_src>
import functools

import jax
import jax.numpy as jnp
from jax.experimental import pallas as pl
from jax.experimental.pallas import tpu as pltpu

LANE = 128
SUBLANE = 8
_FALLBACK_VMEM_BUDGET = 48 * 1024 * 1024  # safe scoped-VMEM target on all generations


def _round_up(n, m):
    return ((n + m - 1) // m) * m


def _vmem_budget_bytes():
    """75% of physical VMEM: ~48 MiB on v7x (64 MiB), ~96 MiB on v5e/v6e (128 MiB)."""
    try:
        cap = int(pltpu.get_tpu_info().vmem_capacity_bytes)
        return (cap * 3) // 4
    except Exception:
        return _FALLBACK_VMEM_BUDGET


def _linear_net_kernel(x_ref, w1_ref, b1_ref, w2_ref, b2_ref, o_ref):
    """One batch tile: y = relu(x @ W1 + b1) @ W2 + b2, fully fused in VMEM."""
    x = x_ref[...].astype(w1_ref.dtype)  # no-op when dtypes match; bf16 MXU when not
    h = jnp.dot(x, w1_ref[...], preferred_element_type=jnp.float32)
    h = jnp.maximum(h + b1_ref[...], 0.0)  # f32 bias + ReLU epilogue
    y = jnp.dot(h.astype(w2_ref.dtype), w2_ref[...],
                preferred_element_type=jnp.float32)
    o_ref[...] = (y + b2_ref[...]).astype(o_ref.dtype)


def prepare_params(w1, b1, w2, b2, dtype=jnp.float32):
    """One-time parameter prep (at init, NOT per forward call).

    PyTorch layout (w: [out, in], b: [out]) -> MXU-friendly, lane-dense layout:
      W1: (in_size, out_p)   -- contraction dim unpadded so x streams unpadded
      W2: (out_p,  out_p)    -- zero-padded, preserves numerics exactly
      b : (1, out_p) f32 rows
    Use dtype=jnp.bfloat16 on v6e/v7x to halve resident-weight (and MXU input) traffic.
    """
    out_size, in_size = w1.shape
    out_p = _round_up(out_size, LANE)

    w1_t = jnp.zeros((in_size, out_p), dtype).at[:, :out_size].set(
        jnp.asarray(w1, dtype).T)
    w2_t = jnp.zeros((out_p, out_p), dtype).at[:out_size, :out_size].set(
        jnp.asarray(w2, dtype).T)
    b1_r = jnp.zeros((1, out_p), jnp.float32).at[0, :out_size].set(
        jnp.asarray(b1, jnp.float32))
    b2_r = jnp.zeros((1, out_p), jnp.float32).at[0, :out_size].set(
        jnp.asarray(b2, jnp.float32))

    return dict(w1=w1_t, b1=b1_r, w2=w2_t, b2=b2_r, out_size=out_size)


def _vmem_estimate(tile_b, in_size, out_p, x_bytes, w_bytes):
    est = (2 * tile_b * in_size * x_bytes       # streamed x tile (double-buffered)
           + 2 * tile_b * out_p * 4             # output tile, f32 (double-buffered)
           + tile_b * out_p * 4                 # f32 intermediate h
           + (in_size * out_p + out_p * out_p) * w_bytes   # resident weights (1x)
           + 2 * out_p * 4)                     # biases
    if x_bytes != w_bytes:
        est += tile_b * in_size * w_bytes       # in-kernel cast copy of x tile
    if w_bytes != 4:
        est += tile_b * out_p * w_bytes         # cast copy of h for the 2nd matmul
    return est


@functools.partial(jax.jit, static_argnames=("out_size", "tile_b"))
def _forward(x, w1, b1, w2, b2, *, out_size, tile_b=None):
    B = x.shape[0]
    in_size, out_p = w1.shape
    x_bytes = jnp.dtype(x.dtype).itemsize
    w_bytes = jnp.dtype(w1.dtype).itemsize

    budget = _vmem_budget_bytes()

    # --- pick the batch tile -------------------------------------------------
    if tile_b is None:
        tile_b = 4096 if max(in_size, out_p) <= 512 else 1024
    # cap at the batch, and at ceil(B/2) so the grid has >= 2 steps (v7x: 2 TCs)
    tile_b = min(int(tile_b),
                 _round_up(B, SUBLANE),
                 max(SUBLANE, _round_up(pl.cdiv(B, 2), SUBLANE)))
    tile_b = max(_round_up(tile_b, SUBLANE), SUBLANE)
    while tile_b > SUBLANE and _vmem_estimate(
            tile_b, in_size, out_p, x_bytes, w_bytes) > budget:
        tile_b = max(_round_up(tile_b // 2, SUBLANE), SUBLANE)

    grid = (pl.cdiv(B, tile_b),)   # ragged last block handled by Pallas masking

    flops = 2 * B * (in_size * out_p + out_p * out_p)
    bytes_accessed = (B * in_size * x_bytes
                      + (in_size * out_p + out_p * out_p) * w_bytes
                      + 2 * out_p * 4
                      + B * out_p * 4)

    def call(single_buffer_weights):
        def resident(shape):
            if single_buffer_weights:
                return pl.BlockSpec(shape, lambda i: (0, 0),
                                    pipeline_mode=pl.Buffered(1))
            return pl.BlockSpec(shape, lambda i: (0, 0))

        return pl.pallas_call(
            _linear_net_kernel,
            out_shape=jax.ShapeDtypeStruct((B, out_p), jnp.float32),
            grid_spec=pltpu.PrefetchScalarGridSpec(
                num_scalar_prefetch=0,
                grid=grid,
                in_specs=[
                    pl.BlockSpec((tile_b, in_size), lambda i: (i, 0)),  # x (streamed, unpadded)
                    resident((in_size, out_p)),                          # W1 (resident)
                    resident((1, out_p)),                                # b1 (resident)
                    resident((out_p, out_p)),                            # W2 (resident)
                    resident((1, out_p)),                                # b2 (resident)
                ],
                out_specs=pl.BlockSpec((tile_b, out_p), lambda i: (i, 0)),
            ),
            compiler_params=pltpu.CompilerParams(
                dimension_semantics=("parallel",),   # batch grid shards across v7x's 2 TCs
                vmem_limit_bytes=budget,
            ),
            cost_estimate=pl.CostEstimate(
                flops=flops, transcendentals=0, bytes_accessed=bytes_accessed),
        )(x, w1, b1, w2, b2)

    try:
        out = call(True)          # single-buffered resident weights
    except Exception:
        out = call(False)         # fallback: default double-buffering

    if out_size != out_p:
        out = out[:, :out_size]   # lane-padding trim; free when out_size % 128 == 0
    return out


def linear_network_forward(x, params, *, tile_b=None):
    """x: [B, input_size]; params: output of prepare_params. Returns [B, output_size] f32."""
    return _forward(x, params["w1"], params["b1"], params["w2"], params["b2"],
                    out_size=params["out_size"], tile_b=tile_b)


def _init_linear(key, out_features, in_features):
    # Deterministic init mimicking PyTorch's default U(-1/sqrt(fan_in), 1/sqrt(fan_in)).
    kw, kb = jax.random.split(key)
    bound = 1.0 / jnp.sqrt(jnp.float32(in_features))
    w = jax.random.uniform(kw, (out_features, in_features), jnp.float32, -bound, bound)
    b = jax.random.uniform(kb, (out_features,), jnp.float32, -bound, bound)
    return w, b


if __name__ == "__main__":
    key = jax.random.PRNGKey(0)
    k_x, k_fc1, k_fc2 = jax.random.split(key, 3)

    batch = 8
    input_size = 32
    output_size = 32

    x = jax.random.normal(k_x, (batch, input_size), jnp.float32)
    w1, b1 = _init_linear(k_fc1, output_size, input_size)
    w2, b2 = _init_linear(k_fc2, output_size, output_size)

    # Pure-JAX reference (same semantics as the PyTorch forward).
    h_ref = jnp.maximum(x @ w1.T + b1, 0.0)
    y_ref = h_ref @ w2.T + b2

    # Exact f32 path.
    params_f32 = prepare_params(w1, b1, w2, b2, dtype=jnp.float32)
    y = jax.block_until_ready(linear_network_forward(x, params_f32))
    assert y.shape == y_ref.shape, f"shape mismatch: {y.shape} vs {y_ref.shape}"
    assert jnp.allclose(y, y_ref, atol=1e-5, rtol=1e-5), "f32 mismatch vs reference"

    # bf16-weight path (recommended default on v6e/v7x: halves resident/MXU traffic,
    # f32 accumulation kept) -- checked at loose tolerance.
    params_bf16 = prepare_params(w1, b1, w2, b2, dtype=jnp.bfloat16)
    y_bf16 = jax.block_until_ready(linear_network_forward(x, params_bf16))
    assert y_bf16.shape == y_ref.shape
    assert jnp.allclose(y_bf16, y_ref, atol=1e-1, rtol=1e-1), "bf16 mismatch vs reference"

    print("KERNEL_OK")
</pallas_src>

<mosaic_0001>
module attributes {stable_mosaic.version = 11 : i64} {
  func.func @_linear_net_kernel(%arg0: i32, %arg1: memref<8x32xf32, #tpu.memory_space<vmem>>, %arg2: memref<32x128xf32, #tpu.memory_space<vmem>>, %arg3: memref<1x128xf32, #tpu.memory_space<vmem>>, %arg4: memref<128x128xf32, #tpu.memory_space<vmem>>, %arg5: memref<1x128xf32, #tpu.memory_space<vmem>>, %arg6: memref<8x128xf32, #tpu.memory_space<vmem>>) attributes {dimension_semantics = [#tpu.dimension_semantics<parallel>], iteration_bounds = array<i64: 1>, scalar_prefetch = 0 : i64, scratch_operands = 0 : i64, tpu.core_type = #tpu.core_type<tc>, window_params = [{transform_indices = @transform_0, window_bounds = array<i64: 8, 32>}, {pipeline_mode = #tpu.pipeline_mode<synchronous>, transform_indices = @transform_1, window_bounds = array<i64: 32, 128>}, {pipeline_mode = #tpu.pipeline_mode<synchronous>, transform_indices = @transform_2, window_bounds = array<i64: 1, 128>}, {pipeline_mode = #tpu.pipeline_mode<synchronous>, transform_indices = @transform_3, window_bounds = array<i64: 128, 128>}, {pipeline_mode = #tpu.pipeline_mode<synchronous>, transform_indices = @transform_4, window_bounds = array<i64: 1, 128>}, {transform_indices = @transform_5, window_bounds = array<i64: 8, 128>}]} {
    %c0 = arith.constant 0 : index
    %c0_0 = arith.constant 0 : index
    %0 = vector.load %arg1[%c0, %c0_0] : memref<8x32xf32, #tpu.memory_space<vmem>>, vector<8x32xf32>
    %c0_1 = arith.constant 0 : index
    %c0_2 = arith.constant 0 : index
    %1 = vector.load %arg2[%c0_1, %c0_2] : memref<32x128xf32, #tpu.memory_space<vmem>>, vector<32x128xf32>
    %cst = arith.constant dense<0.000000e+00> : vector<8x128xf32>
    %2 = tpu.matmul %0, %1, %cst {dimension_numbers = #tpu.dot_dimension_numbers<[1], [0], [0], [1], [0, 0, 1, 1], [], []>} : vector<8x32xf32>, vector<32x128xf32>, vector<8x128xf32> -> vector<8x128xf32>
    %c0_3 = arith.constant 0 : index
    %c0_4 = arith.constant 0 : index
    %3 = vector.load %arg3[%c0_3, %c0_4] : memref<1x128xf32, #tpu.memory_space<vmem>>, vector<1x128xf32>
    %4 = vector.broadcast %3 : vector<1x128xf32> to vector<8x128xf32>
    %5 = arith.addf %2, %4 : vector<8x128xf32>
    %cst_5 = arith.constant 0.000000e+00 : f32
    %6 = vector.broadcast %cst_5 : f32 to vector<8x128xf32>
    %7 = arith.maximumf %5, %6 : vector<8x128xf32>
    %c0_6 = arith.constant 0 : index
    %c0_7 = arith.constant 0 : index
    %8 = vector.load %arg4[%c0_6, %c0_7] : memref<128x128xf32, #tpu.memory_space<vmem>>, vector<128x128xf32>
    %cst_8 = arith.constant dense<0.000000e+00> : vector<8x128xf32>
    %9 = tpu.matmul %7, %8, %cst_8 {dimension_numbers = #tpu.dot_dimension_numbers<[1], [0], [0], [1], [0, 0, 1, 1], [], []>} : vector<8x128xf32>, vector<128x128xf32>, vector<8x128xf32> -> vector<8x128xf32>
    %c0_9 = arith.constant 0 : index
    %c0_10 = arith.constant 0 : index
    %10 = vector.load %arg5[%c0_9, %c0_10] : memref<1x128xf32, #tpu.memory_space<vmem>>, vector<1x128xf32>
    %11 = vector.broadcast %10 : vector<1x128xf32> to vector<8x128xf32>
    %12 = arith.addf %9, %11 : vector<8x128xf32>
    %c0_11 = arith.constant 0 : index
    %c0_12 = arith.constant 0 : index
    %13 = vector.load %arg6[%c0_11, %c0_12] : memref<8x128xf32, #tpu.memory_space<vmem>>, vector<8x128xf32>
    tpu.vector_store %arg6[%c0_11, %c0_12], %12 {strides = array<i32>} : memref<8x128xf32, #tpu.memory_space<vmem>>, vector<8x128xf32>,
    return
  }
  func.func @transform_0(%arg0: i32) -> (i32, i32) {
    %c0_i32 = arith.constant 0 : i32
    %c0_i32_0 = arith.constant 0 : i32
    return %arg0, %c0_i32 : i32, i32
  }
  func.func @transform_1(%arg0: i32) -> (i32, i32) {
    %c0_i32 = arith.constant 0 : i32
    %c0_i32_0 = arith.constant 0 : i32
    %c0_i32_1 = arith.constant 0 : i32
    return %c0_i32, %c0_i32_0 : i32, i32
  }
  func.func @transform_2(%arg0: i32) -> (i32, i32) {
    %c0_i32 = arith.constant 0 : i32
    %c0_i32_0 = arith.constant 0 : i32
    %c0_i32_1 = arith.constant 0 : i32
    return %c0_i32, %c0_i32_0 : i32, i32
  }
  func.func @transform_3(%arg0: i32) -> (i32, i32) {
    %c0_i32 = arith.constant 0 : i32
    %c0_i32_0 = arith.constant 0 : i32
    %c0_i32_1 = arith.constant 0 : i32
    return %c0_i32, %c0_i32_0 : i32, i32
  }
  func.func @transform_4(%arg0: i32) -> (i32, i32) {
    %c0_i32 = arith.constant 0 : i32
    %c0_i32_0 = arith.constant 0 : i32
    %c0_i32_1 = arith.constant 0 : i32
    return %c0_i32, %c0_i32_0 : i32, i32
  }
  func.func @transform_5(%arg0: i32) -> (i32, i32) {
    %c0_i32 = arith.constant 0 : i32
    %c0_i32_0 = arith.constant 0 : i32
    return %arg0, %c0_i32 : i32, i32
  }
}

</mosaic_0001>

<llo_original>
// kernel: _forward.1
$region0: #{_forward.1}
  #allocation0 [shape = 'u32[]', space=smem, size = 0x4, offset = 0x4, fixed_abs, tag = 'smem constant byte address 0x4 - core index']
  #allocation1 [shape = 'u32[144,128]{1,0:T(1,128)}', space=vmem, size = 0x12000, scoped, tag = 'internal scratch']
  %s0 = inlined_call_operand.hbm [shape: f32[8,32], index: 0, kind: input, shape index: {}]
  %s1 = inlined_call_operand.hbm [shape: f32[32,128], index: 1, kind: input, shape index: {}]
  %s2 = inlined_call_operand.vmem [shape: f32[1,128], index: 2, kind: input, shape index: {}]
  %s3 = inlined_call_operand.hbm [shape: f32[128,128], index: 3, kind: input, shape index: {}]
  %s4 = inlined_call_operand.vmem [shape: f32[1,128], index: 4, kind: input, shape index: {}]
  %s5 = inlined_call_operand.hbm [shape: f32[8,128], index: 5, kind: output, shape index: {}]
  %s6 = sld [smem:[#allocation0]]
  $region42: #{_forward.1} parent=0
    _
  %s8 = ssub.s32 1, %s6
  %s9 = scalar_select 0, %s8, %s6
  $region1: #{_forward.1} parent=0
    #allocation2 [shape = 'u8[4096]{0}', space=vmem, size = 0x1000, scoped, tag = 'input window, operand 0, single buffered']
    #allocation3 [shape = 's32[1]{0}', space=sflag, size = 0x4, scoped, tag = 'scoped memory for _forward.1']
    #allocation4 [shape = 's32[1]{0}', space=sflag, size = 0x4, scoped, tag = 'scoped memory for _forward.1']
    #allocation5 [shape = 'u8[16384]{0}', space=vmem, size = 0x4000, scoped, tag = 'input window, operand 1, single buffered']
    #allocation6 [shape = 's32[1]{0}', space=sflag, size = 0x4, scoped, tag = 'scoped memory for _forward.1']
    #allocation7 [shape = 'u8[65536]{0}', space=vmem, size = 0x10000, scoped, tag = 'input window, operand 3, single buffered']
    #allocation8 [shape = 'u8[4096]{0}', space=vmem, size = 0x1000, scoped, tag = 'output window, operand 0, single buffered']
    %10 = vsyncpa [#allocation3], 0
    %11 = vsyncpa [#allocation6], 0
    %12 = vsyncpa [#allocation4], 0
    // Predicated region
    $region2: #{_forward.1} parent=1 // pred_check
      _
    $region3: #{_forward.1} parent=1 // pred_check_branch
      %14 = sbr.rel (0) target = $region5
    $region4: #{_forward.1} parent=1 // pred_region
      %s16 = ssub.s32 128, 128
      %17 = vsyncadd [#allocation3], %s16
      %s19 = sshll.u32 [#allocation2], 4
      %s20 = int_to_ptr.vmem [resolvable:$true] %s19
      %22 = dma.hbm_to_vmem [thread:$0]  %s0, 128, %s20, [#allocation3]
    $region5: #{_forward.1} parent=1 // pred_fallthru
      _
    // Predicated region
    $region6: #{_forward.1} parent=1 // pred_check
      _
    $region7: #{_forward.1} parent=1 // pred_check_branch
      %24 = sbr.rel (0) target = $region9
    $region8: #{_forward.1} parent=1 // pred_region
      %s26 = ssub.s32 512, 512
      %27 = vsyncadd [#allocation6], %s26
      %s28 = sshll.u32 [#allocation5], 4
      %s29 = int_to_ptr.vmem [resolvable:$true] %s28
      %34 = dma.hbm_to_vmem [thread:$0]  %s1, 512, %s29, [#allocation6], 128, 128, 8
    $region9: #{_forward.1} parent=1 // pred_fallthru
      _
    // Predicated region
    $region10: #{_forward.1} parent=1 // pred_check
      _
    $region11: #{_forward.1} parent=1 // pred_check_branch
      %36 = sbr.rel (0) target = $region13
    $region12: #{_forward.1} parent=1 // pred_region
      _
    $region13: #{_forward.1} parent=1 // pred_fallthru
      _
    // Predicated region
    $region14: #{_forward.1} parent=1 // pred_check
      _
    $region15: #{_forward.1} parent=1 // pred_check_branch
      %38 = sbr.rel (0) target = $region17
    $region16: #{_forward.1} parent=1 // pred_region
      %s40 = ssub.s32 2048, 2048
      %41 = vsyncadd [#allocation6], %s40
      %s42 = sshll.u32 [#allocation7], 4
      %s43 = int_to_ptr.vmem [resolvable:$true] %s42
      %48 = dma.hbm_to_vmem [thread:$0]  %s3, 2048, %s43, [#allocation6], 128, 128, 8
    $region17: #{_forward.1} parent=1 // pred_fallthru
      _
    // Predicated region
    $region18: #{_forward.1} parent=1 // pred_check
      _
    $region19: #{_forward.1} parent=1 // pred_check_branch
      %50 = sbr.rel (0) target = $region21
    $region20: #{_forward.1} parent=1 // pred_region
      _
    $region21: #{_forward.1} parent=1 // pred_fallthru
      _
    // Predicated region
    $region22: #{_forward.1} parent=1 // pred_check
      _
    $region23: #{_forward.1} parent=1 // pred_check_branch
      %52 = sbr.rel (0) target = $region25
    $region24: #{_forward.1} parent=1 // pred_region
      %53 = dma.done [#allocation3], 128
    $region25: #{_forward.1} parent=1 // pred_fallthru
      _
    // Predicated region
    $region26: #{_forward.1} parent=1 // pred_check
      _
    $region27: #{_forward.1} parent=1 // pred_check_branch
      %55 = sbr.rel (0) target = $region29
    $region28: #{_forward.1} parent=1 // pred_region
      %56 = dma.done [#allocation6], 512
    $region29: #{_forward.1} parent=1 // pred_fallthru
      _
    // Predicated region
    $region30: #{_forward.1} parent=1 // pred_check
      _
    $region31: #{_forward.1} parent=1 // pred_check_branch
      %58 = sbr.rel (0) target = $region33
    $region32: #{_forward.1} parent=1 // pred_region
      %59 = dma.done [#allocation6], 2048
    $region33: #{_forward.1} parent=1 // pred_fallthru
      _
    %v60 = vld [vmem:[#allocation2] sm:$0xff]
    %v61 = vld [vmem:[#allocation5] sm:$0xff]
    %v62 = vld [vmem:[#allocation5 + $0x8] sm:$0xff]
    %v63 = vld [vmem:[#allocation5 + $0x10] sm:$0xff]
    %v64 = vld [vmem:[#allocation5 + $0x18] sm:$0xff]
    %v65 = vld [vmem:[%s2] sm:$0x1]
    %v67 = vlaneseq
    %v68 = vshrl.u32 %v67, 7
    %v69 = vsub.s32 0, %v68
    %v70 = vrot.slane %v65, %v69
    %vm72 = vcmask 261120
    %v74 = vsel %vm72, %v60, 0
    %76 = vmatprep.subr.mxu0 0.0
    %77 = vmatpush1.msra.mxu0 %v61
    %78 = vmatprep.subr.mxu0 0.0
    %79 = vmatpush1.msra.mxu0 %v62
    %80 = vmatprep.subr.mxu0 0.0
    %81 = vmatpush1.msra.mxu0 %v63
    %82 = vmatprep.subr.mxu0 0.0
    %83 = vmatpush1.msra.mxu0 %v64
    %84 = vmatprep.subr.mxu0 0.0
    %85 = vmatpush1.msra.mxu0 0.0
    %86 = vmatprep.subr.mxu0 0.0
    %87 = vmatpush1.msra.mxu0 0.0
    %88 = vmatprep.subr.mxu0 0.0
    %89 = vmatpush1.msra.mxu0 0.0
    %90 = vmatprep.subr.mxu0 0.0
    %91 = vmatpush1.msra.mxu0 0.0
    %92 = vmatprep.subr.mxu0 0.0
    %93 = vmatpush1.msra.mxu0 0.0
    %94 = vmatprep.subr.mxu0 0.0
    %95 = vmatpush1.msra.mxu0 0.0
    %96 = vmatprep.subr.mxu0 0.0
    %97 = vmatpush1.msra.mxu0 0.0
    %98 = vmatprep.subr.mxu0 0.0
    %99 = vmatpush1.msra.mxu0 0.0
    %100 = vmatprep.subr.mxu0 0.0
    %101 = vmatpush1.msra.mxu0 0.0
    %102 = vmatprep.subr.mxu0 0.0
    %103 = vmatpush1.msra.mxu0 0.0
    %104 = vmatprep.subr.mxu0 0.0
    %105 = vmatpush1.msra.mxu0 0.0
    %106 = vmatprep.subr.mxu0 0.0
    %107 = vmatpush1.msra.mxu0 0.0
    %108 = vmatprep.subr.mxu0 0.0
    %109 = vmatpush1.msra.mxu0 0.0
    %110 = vmatprep.subr.mxu0 0.0
    %111 = vmatpush1.msra.mxu0 0.0
    %112 = vmatprep.subr.mxu0 0.0
    %113 = vmatpush1.msra.mxu0 0.0
    %114 = vmatprep.subr.mxu0 0.0
    %115 = vmatpush1.msra.mxu0 0.0
    %116 = vmatprep.subr.mxu0 0.0
    %117 = vmatpush1.msra.mxu0 0.0
    %118 = vmatprep.subr.mxu0 0.0
    %119 = vmatpush1.msra.mxu0 0.0
    %120 = vmatprep.subr.mxu0 0.0
    %121 = vmatpush1.msra.mxu0 0.0
    %122 = vmatprep.subr.mxu0 0.0
    %123 = vmatpush1.msra.mxu0 0.0
    %124 = vmatprep.subr.mxu0 0.0
    %125 = vmatpush1.msra.mxu0 0.0
    %126 = vmatprep.subr.mxu0 0.0
    %127 = vmatpush1.msra.mxu0 0.0
    %128 = vmatprep.subr.mxu0 0.0
    %129 = vmatpush1.msra.mxu0 0.0
    %130 = vmatprep.subr.mxu0 0.0
    %131 = vmatpush1.msra.mxu0 0.0
    %132 = vmatprep.subr.mxu0 0.0
    %133 = vmatpush1.msra.mxu0 0.0
    %134 = vmatprep.subr.mxu0 0.0
    %135 = vmatpush1.msra.mxu0 0.0
    %136 = vmatprep.subr.mxu0 0.0
    %137 = vmatpush1.msra.mxu0 0.0
    %138 = vmatprep.subr.mxu0 0.0
    %139 = vmatpush1.msra.mxu0 0.0
    %140 = vmatprep.mubr.f32.mxu0 0.0
    %141 = vmatmul.mubr.f32.gmra.mrb[0].mxu0 %v74
    %v142 = vpop.f32.mrb[0].mxu0
    %v143 = vadd.f32 %v70, %v142
    %v144 = vpop.f32.mrb[0].mxu0
    %145 = vdwg.mxu0
    %v146 = vmax.f32 %v143, 0.0
    %v147 = vld [vmem:[#allocation7] sm:$0xff]
    %v148 = vld [vmem:[#allocation7 + $0x8] sm:$0xff]
    %v149 = vld [vmem:[#allocation7 + $0x10] sm:$0xff]
    %v150 = vld [vmem:[#allocation7 + $0x18] sm:$0xff]
    %v151 = vld [vmem:[#allocation7 + $0x20] sm:$0xff]
    %v152 = vld [vmem:[#allocation7 + $0x28] sm:$0xff]
    %v153 = vld [vmem:[#allocation7 + $0x30] sm:$0xff]
    %v154 = vld [vmem:[#allocation7 + $0x38] sm:$0xff]
    %v155 = vld [vmem:[#allocation7 + $0x40] sm:$0xff]
    %v156 = vld [vmem:[#allocation7 + $0x48] sm:$0xff]
    %v157 = vld [vmem:[#allocation7 + $0x50] sm:$0xff]
    %v158 = vld [vmem:[#allocation7 + $0x58] sm:$0xff]
    %v159 = vld [vmem:[#allocation7 + $0x60] sm:$0xff]
    %v160 = vld [vmem:[#allocation7 + $0x68] sm:$0xff]
    %v161 = vld [vmem:[#allocation7 + $0x70] sm:$0xff]
    %v162 = vld [vmem:[#allocation7 + $0x78] sm:$0xff]
    %v163 = vld [vmem:[%s4] sm:$0x1]
    %v165 = vlaneseq
    %v166 = vshrl.u32 %v165, 7
    %v167 = vsub.s32 0, %v166
    %v168 = vrot.slane %v163, %v167
    %170 = vmatprep.subr.mxu0 0.0
    %171 = vmatpush1.msra.mxu0 %v147
    %172 = vmatprep.subr.mxu0 0.0
    %173 = vmatpush1.msra.mxu0 %v148
    %174 = vmatprep.subr.mxu0 0.0
    %175 = vmatpush1.msra.mxu0 %v149
    %176 = vmatprep.subr.mxu0 0.0
    %177 = vmatpush1.msra.mxu0 %v150
    %178 = vmatprep.subr.mxu0 0.0
    %179 = vmatpush1.msra.mxu0 %v151
    %180 = vmatprep.subr.mxu0 0.0
    %181 = vmatpush1.msra.mxu0 %v152
    %182 = vmatprep.subr.mxu0 0.0
    %183 = vmatpush1.msra.mxu0 %v153
    %184 = vmatprep.subr.mxu0 0.0
    %185 = vmatpush1.msra.mxu0 %v154
    %186 = vmatprep.subr.mxu0 0.0
    %187 = vmatpush1.msra.mxu0 %v155
    %188 = vmatprep.subr.mxu0 0.0
    %189 = vmatpush1.msra.mxu0 %v156
    %190 = vmatprep.subr.mxu0 0.0
    %191 = vmatpush1.msra.mxu0 %v157
    %192 = vmatprep.subr.mxu0 0.0
    %193 = vmatpush1.msra.mxu0 %v158
    %194 = vmatprep.subr.mxu0 0.0
    %195 = vmatpush1.msra.mxu0 %v159
    %196 = vmatprep.subr.mxu0 0.0
    %197 = vmatpush1.msra.mxu0 %v160
    %198 = vmatprep.subr.mxu0 0.0
    %199 = vmatpush1.msra.mxu0 %v161
    %200 = vmatprep.subr.mxu0 0.0
    %201 = vmatpush1.msra.mxu0 %v162
    %202 = vmatprep.subr.mxu0 0.0
    %203 = vmatpush1.msra.mxu0 0.0
    %204 = vmatprep.subr.mxu0 0.0
    %205 = vmatpush1.msra.mxu0 0.0
    %206 = vmatprep.subr.mxu0 0.0
    %207 = vmatpush1.msra.mxu0 0.0
    %208 = vmatprep.subr.mxu0 0.0
    %209 = vmatpush1.msra.mxu0 0.0
    %210 = vmatprep.subr.mxu0 0.0
    %211 = vmatpush1.msra.mxu0 0.0
    %212 = vmatprep.subr.mxu0 0.0
    %213 = vmatpush1.msra.mxu0 0.0
    %214 = vmatprep.subr.mxu0 0.0
    %215 = vmatpush1.msra.mxu0 0.0
    %216 = vmatprep.subr.mxu0 0.0
    %217 = vmatpush1.msra.mxu0 0.0
    %218 = vmatprep.subr.mxu0 0.0
    %219 = vmatpush1.msra.mxu0 0.0
    %220 = vmatprep.subr.mxu0 0.0
    %221 = vmatpush1.msra.mxu0 0.0
    %222 = vmatprep.subr.mxu0 0.0
    %223 = vmatpush1.msra.mxu0 0.0
    %224 = vmatprep.subr.mxu0 0.0
    %225 = vmatpush1.msra.mxu0 0.0
    %226 = vmatprep.subr.mxu0 0.0
    %227 = vmatpush1.msra.mxu0 0.0
    %228 = vmatprep.subr.mxu0 0.0
    %229 = vmatpush1.msra.mxu0 0.0
    %230 = vmatprep.subr.mxu0 0.0
    %231 = vmatpush1.msra.mxu0 0.0
    %232 = vmatprep.subr.mxu0 0.0
    %233 = vmatpush1.msra.mxu0 0.0
    %234 = vmatprep.mubr.f32.mxu0 0.0
    %235 = vmatmul.mubr.f32.gmra.mrb[0].mxu0 %v146
    %v236 = vpop.f32.mrb[0].mxu0
    %v237 = vadd.f32 %v168, %v236
    %v238 = vpop.f32.mrb[0].mxu0
    %239 = vdwg.mxu0
    %240 = vst [vmem:[#allocation8] sm:$0xff] %v237
    // Predicated region
    $region34: #{_forward.1} parent=1 // pred_check
      _
    $region35: #{_forward.1} parent=1 // pred_check_branch
      %242 = sbr.rel (0) target = $region37
    $region36: #{_forward.1} parent=1 // pred_region
      %s244 = ssub.s32 128, 128
      %245 = vsyncadd [#allocation4], %s244
      %s247 = sshll.u32 [#allocation8], 4
      %s248 = int_to_ptr.vmem [resolvable:$true] %s247
      %250 = dma.vmem_to_hbm [thread:$0]  %s248, 128, %s5, [#allocation4]
    $region37: #{_forward.1} parent=1 // pred_fallthru
      _
    // Predicated region
    $region38: #{_forward.1} parent=1 // pred_check
      _
    $region39: #{_forward.1} parent=1 // pred_check_branch
      %252 = sbr.rel (0) target = $region41
    $region40: #{_forward.1} parent=1 // pred_region
      %253 = dma.done [#allocation4], 128
    $region41: #{_forward.1} parent=1 // pred_fallthru
      _
    %254 = vsyncpa [#allocation3], 1
    %255 = vsyncpa [#allocation6], 1
    %256 = vsyncpa [#allocation4], 1

</llo_original>
